<compile_context>
chip_gen: v6e
topology: v6e:2x2x1
jax: 0.10.0
libtpu: 0.0.40
codegen_flags: <defaults>
</compile_context>

<pallas_src>
import jax
import jax.numpy as jnp
from jax.experimental import pallas as pl
from jax.experimental.pallas import tpu as pltpu

H_BERT = 768      # self.input_dim
H_PROJ = 512      # classifier_reg input_dim
OUT_REG = 1       # Text_Classifier_reg output_dim


def _round_up(x, m):
    return ((x + m - 1) // m) * m


# ---------------------------------------------------------------------------
# Kernel 1: 'single_cls' body (used both grid-less and batch-tiled)
#   T_feature  = ReLU(pooler @ W1 + b1)          (Projector, assumed)
#   reg_result = sum(T_feature * w2_row) + b2    (Linear(512,1) as lane reduce)
# pooler / W1 are fed as bf16 (halves the dominant weight/activation DMA,
# native MXU path on v6e/v7x); accumulation and elementwise math stay f32
# (v5e has no bf16 VPU).  The MSE is computed in XLA from reg.
# ---------------------------------------------------------------------------
def _single_cls_kernel(pooler_ref, w1_ref, b1_ref, w2_ref, b2_ref, reg_ref):
    h = jnp.dot(pooler_ref[...], w1_ref[...],
                preferred_element_type=jnp.float32)              # (TB, 512) f32
    h = jnp.maximum(h + b1_ref[...], 0.0)                        # Projector ReLU
    # N=1 second matmul replaced by VPU multiply + lane reduce (keeps MXU free).
    reg_ref[...] = jnp.sum(h * w2_ref[...], axis=-1, keepdims=True) + b2_ref[...]


def single_cls_forward(pooler_output, w1, b1, w2, b2, labels, *,
                       block_b=1024, fused_max_b=512):
    B = pooler_output.shape[0]
    pooler16 = pooler_output.astype(jnp.bfloat16)
    w1_16 = w1.astype(jnp.bfloat16)
    b1r = b1.reshape(1, H_PROJ).astype(jnp.float32)
    w2r = w2.reshape(1, H_PROJ).astype(jnp.float32)    # (512,1) -> (1,512) row
    b2r = b2.reshape(1, 1).astype(jnp.float32)

    if B <= min(fused_max_b, block_b):
        # Tiny batch: grid-step overhead would dominate; keep single fused block.
        vmem = pl.BlockSpec(memory_space=pltpu.MemorySpace.VMEM)
        reg = pl.pallas_call(
            _single_cls_kernel,
            out_shape=jax.ShapeDtypeStruct((B, OUT_REG), jnp.float32),
            in_specs=[vmem] * 5,
            out_specs=vmem,
        )(pooler16, w1_16, b1r, w2r, b2r)
    else:
        # Batch-tiled: big tiles amortize the ~0.35 us grid-step overhead, but
        # cap at ceil(B/2) (rounded to a sublane multiple) so the 'parallel'
        # batch axis keeps >=2 steps and both v7x TensorCores get work.
        # VMEM at tb=1024: pooler bf16 1.5 MiB x2 buf + W1 bf16 0.75 MiB x2
        # ~= 5 MiB, well inside even v7x's default 32 MiB scoped VMEM.
        tb = min(block_b, _round_up(pl.cdiv(B, 2), 8))
        tb = max(tb, 8)
        reg = pl.pallas_call(
            _single_cls_kernel,
            out_shape=jax.ShapeDtypeStruct((B, OUT_REG), jnp.float32),
            grid=(pl.cdiv(B, tb),),
            in_specs=[pl.BlockSpec((tb, H_BERT), lambda i: (i, 0)),
                      pl.BlockSpec((H_BERT, H_PROJ), lambda i: (0, 0)),
                      pl.BlockSpec((1, H_PROJ), lambda i: (0, 0)),
                      pl.BlockSpec((1, H_PROJ), lambda i: (0, 0)),
                      pl.BlockSpec((1, 1), lambda i: (0, 0))],
            out_specs=pl.BlockSpec((tb, OUT_REG), lambda i: (i, 0)),
            compiler_params=pltpu.CompilerParams(
                dimension_semantics=("parallel",)),
        )(pooler16, w1_16, b1r, w2r, b2r)

    # nn.MSELoss: trivially cheap (B,)-sized reduce, done in XLA so the kernel
    # carries no lane-sparse labels input / sqerr output.
    loss = jnp.mean((reg.reshape(-1) - labels.astype(jnp.float32)) ** 2)
    return reg, loss


# ---------------------------------------------------------------------------
# Kernel 2: prepend_cls (batch-tiled)
#   outputs = concat([cls_emb(B,1,768), hidden(B,S,768)], dim=1) -> (B,S+1,768)
#   masks   = concat([ones(B,1), masks], dim=1)                  -> (B,S+1)
# Grid over B-tiles ('parallel'); per step a (TB, S+1, H) slab is built
# in-register (cls row broadcast across the tile) and written with a single
# lane-dense full-block store — no offset-by-1 sublane writes.  TB is sized
# against a conservative VMEM budget (double-buffered in + out slabs) so it
# stays safe on v7x's smaller VMEM.
# ---------------------------------------------------------------------------
def _prepend_cls_kernel(hidden_ref, cls_ref, out_ref):
    tb, _, h = hidden_ref.shape
    cls_blk = jnp.broadcast_to(
        cls_ref[...].astype(out_ref.dtype).reshape(1, 1, h), (tb, 1, h))
    out_ref[...] = jnp.concatenate([cls_blk, hidden_ref[...]], axis=1)


def prepend_cls_forward(hidden_states, masks, cls_table, *,
                        vmem_budget_bytes=24 * 1024 * 1024, max_tb=128):
    B, S, H = hidden_states.shape
    dtype_bytes = jnp.dtype(hidden_states.dtype).itemsize
    # Per batch row we hold an (S,H) input slab and an (S+1,H) output slab,
    # each double-buffered by the BlockSpec pipeline.
    bytes_per_row = (2 * S + 1) * H * dtype_bytes
    tb = max(1, min(max_tb, vmem_budget_bytes // (2 * bytes_per_row)))
    tb = min(tb, B)

    text_inputs = pl.pallas_call(
        _prepend_cls_kernel,
        out_shape=jax.ShapeDtypeStruct((B, S + 1, H), hidden_states.dtype),
        grid=(pl.cdiv(B, tb),),
        in_specs=[pl.BlockSpec((tb, S, H), lambda b: (b, 0, 0)),
                  pl.BlockSpec((1, H), lambda b: (0, 0))],
        out_specs=pl.BlockSpec((tb, S + 1, H), lambda b: (b, 0, 0)),
        compiler_params=pltpu.CompilerParams(
            dimension_semantics=("parallel",)),
    )(hidden_states, cls_table)

    # The (B, S+1) mask concat is a tiny lane-sparse op; done in plain JAX per
    # the perf review instead of forcing masked partial stores in the kernel.
    cls_mask = jnp.ones((B, 1), masks.dtype)
    text_attn_mask = jnp.concatenate([cls_mask, masks], axis=1)
    return text_inputs, text_attn_mask


# ---------------------------------------------------------------------------
# Text_Encoder.forward (post-BERT part) driven by the Pallas kernels.
# ---------------------------------------------------------------------------
def text_encoder_forward(params, bert_outputs, text_masks, labels, mode,
                         *, block_b=1024, fused_max_b=512):
    if mode == "single_cls":
        return single_cls_forward(bert_outputs["pooler_output"],
                                  params["proj_w"], params["proj_b"],
                                  params["cls_w"], params["cls_b"],
                                  labels, block_b=block_b,
                                  fused_max_b=fused_max_b)
    else:
        return prepend_cls_forward(bert_outputs["last_hidden_state"],
                                   text_masks, params["cls_table"])


if __name__ == "__main__":
    key = jax.random.PRNGKey(0)
    k = jax.random.split(key, 10)

    B, S = 2, 8

    # --- deterministic parameter init (shapes from __init__) -----------------
    params = {
        # Projector (assumed Linear 768 -> 512)
        "proj_w": jax.random.normal(k[0], (H_BERT, H_PROJ), jnp.float32) * 0.02,
        "proj_b": jax.random.normal(k[1], (H_PROJ,), jnp.float32) * 0.02,
        # Text_Classifier_reg: nn.Linear(512, 1)
        "cls_w": jax.random.normal(k[2], (H_PROJ, OUT_REG), jnp.float32) * 0.02,
        "cls_b": jax.random.normal(k[3], (OUT_REG,), jnp.float32) * 0.02,
        # nn.Embedding(1, 768)
        "cls_table": jax.random.normal(k[4], (1, H_BERT), jnp.float32),
    }

    # --- synthetic BERT outputs (stand-in for AutoModel) ---------------------
    bert_outputs = {
        "pooler_output": jax.random.normal(k[5], (B, H_BERT), jnp.float32),
        "last_hidden_state": jax.random.normal(k[6], (B, S, H_BERT), jnp.float32),
    }
    text_masks = jnp.ones((B, S), jnp.float32)
    labels = jax.random.normal(k[7], (B,), jnp.float32)

    # bf16 views used by the kernels (reference must match the same feed).
    w1_bf = params["proj_w"].astype(jnp.bfloat16)
    w2_row = params["cls_w"].reshape(1, H_PROJ)
    b2_sc = params["cls_b"].reshape(1, 1)

    # --- mode == 'single_cls' (fused small-batch path) ------------------------
    reg_result, reg_loss = text_encoder_forward(params, bert_outputs,
                                                text_masks, labels, "single_cls")
    jax.block_until_ready((reg_result, reg_loss))

    pooler_bf = bert_outputs["pooler_output"].astype(jnp.bfloat16)
    h_ref = jnp.maximum(
        jnp.dot(pooler_bf, w1_bf, preferred_element_type=jnp.float32)
        + params["proj_b"], 0.0)
    reg_ref = jnp.sum(h_ref * w2_row, axis=-1, keepdims=True) + b2_sc
    loss_ref = jnp.mean((reg_ref.reshape(-1) - labels) ** 2)
    assert jnp.allclose(reg_result, reg_ref, atol=2e-3, rtol=2e-3), "reg_result mismatch"
    assert jnp.allclose(reg_loss, loss_ref, atol=2e-3, rtol=2e-3), "reg_loss mismatch"

    # --- 'single_cls' batch-tiled path (forced with small tiles for the test) -
    B2 = 16
    pooler2 = jax.random.normal(k[8], (B2, H_BERT), jnp.float32)
    labels2 = jax.random.normal(k[9], (B2,), jnp.float32)
    reg2, loss2 = single_cls_forward(pooler2, params["proj_w"], params["proj_b"],
                                     params["cls_w"], params["cls_b"], labels2,
                                     block_b=8, fused_max_b=8)
    jax.block_until_ready((reg2, loss2))

    pooler2_bf = pooler2.astype(jnp.bfloat16)
    h2_ref = jnp.maximum(
        jnp.dot(pooler2_bf, w1_bf, preferred_element_type=jnp.float32)
        + params["proj_b"], 0.0)
    reg2_ref = jnp.sum(h2_ref * w2_row, axis=-1, keepdims=True) + b2_sc
    loss2_ref = jnp.mean((reg2_ref.reshape(-1) - labels2) ** 2)
    assert jnp.allclose(reg2, reg2_ref, atol=2e-3, rtol=2e-3), "tiled reg mismatch"
    assert jnp.allclose(loss2, loss2_ref, atol=2e-3, rtol=2e-3), "tiled loss mismatch"

    # --- mode != 'single_cls' (prepend_cls path) ------------------------------
    text_inputs, text_attn_mask = text_encoder_forward(params, bert_outputs,
                                                       text_masks, labels,
                                                       "fusion")
    jax.block_until_ready((text_inputs, text_attn_mask))

    cls_emb = jnp.broadcast_to(params["cls_table"].reshape(1, 1, H_BERT),
                               (B, 1, H_BERT))
    inputs_ref = jnp.concatenate([cls_emb, bert_outputs["last_hidden_state"]],
                                 axis=1)
    mask_ref = jnp.concatenate([jnp.ones((B, 1), jnp.float32), text_masks],
                               axis=1)
    assert text_inputs.shape == (B, S + 1, H_BERT)
    assert text_attn_mask.shape == (B, S + 1)
    assert jnp.allclose(text_inputs, inputs_ref), "prepend_cls inputs mismatch"
    assert jnp.allclose(text_attn_mask, mask_ref), "prepend_cls mask mismatch"

    print("KERNEL_OK")
</pallas_src>

<mosaic_0001>
module attributes {stable_mosaic.version = 11 : i64} {
  func.func @_single_cls_kernel(%arg0: memref<2x768xbf16, #tpu.memory_space<vmem>>, %arg1: memref<768x512xbf16, #tpu.memory_space<vmem>>, %arg2: memref<1x512xf32, #tpu.memory_space<vmem>>, %arg3: memref<1x512xf32, #tpu.memory_space<vmem>>, %arg4: memref<1x1xf32, #tpu.memory_space<vmem>>, %arg5: memref<2x1xf32, #tpu.memory_space<vmem>>) attributes {dimension_semantics = [], scalar_prefetch = 0 : i64, scratch_operands = 0 : i64, tpu.core_type = #tpu.core_type<tc>} {
    %c0 = arith.constant 0 : index
    %c0_0 = arith.constant 0 : index
    %0 = vector.load %arg0[%c0, %c0_0] : memref<2x768xbf16, #tpu.memory_space<vmem>>, vector<2x768xbf16>
    %c0_1 = arith.constant 0 : index
    %c0_2 = arith.constant 0 : index
    %1 = vector.load %arg1[%c0_1, %c0_2] : memref<768x512xbf16, #tpu.memory_space<vmem>>, vector<768x512xbf16>
    %cst = arith.constant dense<0.000000e+00> : vector<2x512xf32>
    %2 = tpu.matmul %0, %1, %cst {dimension_numbers = #tpu.dot_dimension_numbers<[1], [0], [0], [1], [0, 0, 1, 1], [], []>} : vector<2x768xbf16>, vector<768x512xbf16>, vector<2x512xf32> -> vector<2x512xf32>
    %c0_3 = arith.constant 0 : index
    %c0_4 = arith.constant 0 : index
    %3 = vector.load %arg2[%c0_3, %c0_4] : memref<1x512xf32, #tpu.memory_space<vmem>>, vector<1x512xf32>
    %4 = vector.broadcast %3 : vector<1x512xf32> to vector<2x512xf32>
    %5 = arith.addf %2, %4 : vector<2x512xf32>
    %cst_5 = arith.constant 0.000000e+00 : f32
    %6 = vector.broadcast %cst_5 : f32 to vector<2x512xf32>
    %7 = arith.maximumf %5, %6 : vector<2x512xf32>
    %c0_6 = arith.constant 0 : index
    %c0_7 = arith.constant 0 : index
    %8 = vector.load %arg3[%c0_6, %c0_7] : memref<1x512xf32, #tpu.memory_space<vmem>>, vector<1x512xf32>
    %9 = vector.broadcast %8 : vector<1x512xf32> to vector<2x512xf32>
    %10 = arith.mulf %7, %9 : vector<2x512xf32>
    %cst_8 = arith.constant dense<0.000000e+00> : vector<2xf32>
    %11 = vector.multi_reduction <add>, %10, %cst_8 [1] : vector<2x512xf32> to vector<2xf32>
    %12 = vector.shape_cast %11 : vector<2xf32> to vector<2x1xf32>
    %c0_9 = arith.constant 0 : index
    %c0_10 = arith.constant 0 : index
    %13 = vector.load %arg4[%c0_9, %c0_10] : memref<1x1xf32, #tpu.memory_space<vmem>>, vector<1x1xf32>
    %14 = vector.broadcast %13 : vector<1x1xf32> to vector<2x1xf32>
    %15 = arith.addf %12, %14 : vector<2x1xf32>
    %c0_11 = arith.constant 0 : index
    %c0_12 = arith.constant 0 : index
    %16 = vector.load %arg5[%c0_11, %c0_12] : memref<2x1xf32, #tpu.memory_space<vmem>>, vector<2x1xf32>
    tpu.vector_store %arg5[%c0_11, %c0_12], %15 {strides = array<i32>} : memref<2x1xf32, #tpu.memory_space<vmem>>, vector<2x1xf32>,
    return
  }
}

</mosaic_0001>

<llo_original>
// kernel: tpu_custom_call.1
$region0: #{tpu_custom_call.1}
  #allocation0 [shape = 'u32[]', space=smem, size = 0x4, offset = 0x4, fixed_abs, tag = 'smem constant byte address 0x4 - core index']
  #allocation1 [shape = 'u32[144,128]{1,0:T(1,128)}', space=vmem, size = 0x12000, scoped, tag = 'internal scratch']
  #allocation2 [shape = 'f32[1,1]{1,0:T(1,128)S(1)}', space=vmem, size = 0x200, scoped, tag = 'scoped memory for tpu_custom_call.1']
  %s0 = inlined_call_operand.hbm [shape: bf16[2,768], index: 0, kind: input, shape index: {}]
  %s1 = inlined_call_operand.hbm [shape: bf16[768,512], index: 1, kind: input, shape index: {}]
  %s2 = inlined_call_operand.vmem [shape: f32[1,512], index: 2, kind: input, shape index: {}]
  %s3 = inlined_call_operand.hbm [shape: f32[1,512], index: 3, kind: input, shape index: {}]
  %s4 = inlined_call_operand.<no memory space> [shape: f32[1,1], index: 4, kind: input, shape index: {}]
  %s5 = inlined_call_operand.vmem [shape: f32[2,1], index: 5, kind: output, shape index: {}]
  %s6 = sld [smem:[#allocation0]]
  $region42: #{tpu_custom_call.1} parent=0
    _
  %s8 = ssub.s32 1, %s6
  %s9 = scalar_select 0, %s8, %s6
  %v10 = vstv %s4
  %11 = vst [vmem:[#allocation2] sm:$0x1] %v10
  $region1: #{tpu_custom_call.1} parent=0
    #allocation3 [shape = 'u8[3072]{0}', space=vmem, size = 0xc00, scoped, tag = 'input window, operand 0, single buffered']
    #allocation4 [shape = 's32[1]{0}', space=sflag, size = 0x4, scoped, tag = 'scoped memory for tpu_custom_call.1']
    #allocation5 [shape = 'u8[786432]{0}', space=vmem, size = 0xc0000, scoped, tag = 'input window, operand 1, single buffered']
    #allocation6 [shape = 's32[1]{0}', space=sflag, size = 0x4, scoped, tag = 'scoped memory for tpu_custom_call.1']
    #allocation7 [shape = 'u8[2048]{0}', space=vmem, size = 0x800, scoped, tag = 'input window, operand 3, single buffered']
    %12 = vsyncpa [#allocation4], 0
    %13 = vsyncpa [#allocation6], 0
    // Predicated region
    $region2: #{tpu_custom_call.1} parent=1 // pred_check
      _
    $region3: #{tpu_custom_call.1} parent=1 // pred_check_branch
      %15 = sbr.rel (0) target = $region5
    $region4: #{tpu_custom_call.1} parent=1 // pred_region
      %s17 = ssub.s32 96, 96
      %18 = vsyncadd [#allocation4], %s17
      %s20 = sshll.u32 [#allocation3], 4
      %s21 = int_to_ptr.vmem [resolvable:$true] %s20
      %23 = dma.hbm_to_vmem [thread:$0]  %s0, 96, %s21, [#allocation4]
    $region5: #{tpu_custom_call.1} parent=1 // pred_fallthru
      _
    // Predicated region
    $region6: #{tpu_custom_call.1} parent=1 // pred_check
      _
    $region7: #{tpu_custom_call.1} parent=1 // pred_check_branch
      %25 = sbr.rel (0) target = $region9
    $region8: #{tpu_custom_call.1} parent=1 // pred_region
      %s27 = ssub.s32 24576, 24576
      %28 = vsyncadd [#allocation6], %s27
      %s29 = sshll.u32 [#allocation5], 4
      %s30 = int_to_ptr.vmem [resolvable:$true] %s29
      %35 = dma.hbm_to_vmem [thread:$0]  %s1, 24576, %s30, [#allocation6], 256, 256, 16
    $region9: #{tpu_custom_call.1} parent=1 // pred_fallthru
      _
    // Predicated region
    $region10: #{tpu_custom_call.1} parent=1 // pred_check
      _
    $region11: #{tpu_custom_call.1} parent=1 // pred_check_branch
      %37 = sbr.rel (0) target = $region13
    $region12: #{tpu_custom_call.1} parent=1 // pred_region
      _
    $region13: #{tpu_custom_call.1} parent=1 // pred_fallthru
      _
    // Predicated region
    $region14: #{tpu_custom_call.1} parent=1 // pred_check
      _
    $region15: #{tpu_custom_call.1} parent=1 // pred_check_branch
      %39 = sbr.rel (0) target = $region17
    $region16: #{tpu_custom_call.1} parent=1 // pred_region
      %s41 = ssub.s32 64, 64
      %42 = vsyncadd [#allocation6], %s41
      %s44 = sshll.u32 [#allocation7], 4
      %s45 = int_to_ptr.vmem [resolvable:$true] %s44
      %47 = dma.hbm_to_vmem [thread:$0]  %s3, 64, %s45, [#allocation6]
    $region17: #{tpu_custom_call.1} parent=1 // pred_fallthru
      _
    // Predicated region
    $region18: #{tpu_custom_call.1} parent=1 // pred_check
      _
    $region19: #{tpu_custom_call.1} parent=1 // pred_check_branch
      %49 = sbr.rel (0) target = $region21
    $region20: #{tpu_custom_call.1} parent=1 // pred_region
      _
    $region21: #{tpu_custom_call.1} parent=1 // pred_fallthru
      _
    // Predicated region
    $region22: #{tpu_custom_call.1} parent=1 // pred_check
      _
    $region23: #{tpu_custom_call.1} parent=1 // pred_check_branch
      %51 = sbr.rel (0) target = $region25
    $region24: #{tpu_custom_call.1} parent=1 // pred_region
      %52 = dma.done [#allocation4], 96
    $region25: #{tpu_custom_call.1} parent=1 // pred_fallthru
      _
    // Predicated region
    $region26: #{tpu_custom_call.1} parent=1 // pred_check
      _
    $region27: #{tpu_custom_call.1} parent=1 // pred_check_branch
      %54 = sbr.rel (0) target = $region29
    $region28: #{tpu_custom_call.1} parent=1 // pred_region
      %55 = dma.done [#allocation6], 24576
    $region29: #{tpu_custom_call.1} parent=1 // pred_fallthru
      _
    // Predicated region
    $region30: #{tpu_custom_call.1} parent=1 // pred_check
      _
    $region31: #{tpu_custom_call.1} parent=1 // pred_check_branch
      %57 = sbr.rel (0) target = $region33
    $region32: #{tpu_custom_call.1} parent=1 // pred_region
      %58 = dma.done [#allocation6], 64
    $region33: #{tpu_custom_call.1} parent=1 // pred_fallthru
      _
    %v59 = vld [vmem:[#allocation3] sm:$0x3f]
    %v60 = vld [vmem:[#allocation5] sm:$0xff]
    %v61 = vld [vmem:[#allocation5 + $0x8] sm:$0xff]
    %v62 = vld [vmem:[#allocation5 + $0x10] sm:$0xff]
    %v63 = vld [vmem:[#allocation5 + $0x18] sm:$0xff]
    %v64 = vld [vmem:[#allocation5 + $0x20] sm:$0xff]
    %v65 = vld [vmem:[#allocation5 + $0x28] sm:$0xff]
    %v66 = vld [vmem:[#allocation5 + $0x30] sm:$0xff]
    %v67 = vld [vmem:[#allocation5 + $0x38] sm:$0xff]
    %v68 = vld [vmem:[#allocation5 + $0x40] sm:$0xff]
    %v69 = vld [vmem:[#allocation5 + $0x48] sm:$0xff]
    %v70 = vld [vmem:[#allocation5 + $0x50] sm:$0xff]
    %v71 = vld [vmem:[#allocation5 + $0x58] sm:$0xff]
    %v72 = vld [vmem:[#allocation5 + $0x60] sm:$0xff]
    %v73 = vld [vmem:[#allocation5 + $0x68] sm:$0xff]
    %v74 = vld [vmem:[#allocation5 + $0x70] sm:$0xff]
    %v75 = vld [vmem:[#allocation5 + $0x78] sm:$0xff]
    %v76 = vld [vmem:[#allocation5 + $0x80] sm:$0xff]
    %v77 = vld [vmem:[#allocation5 + $0x88] sm:$0xff]
    %v78 = vld [vmem:[#allocation5 + $0x90] sm:$0xff]
    %v79 = vld [vmem:[#allocation5 + $0x98] sm:$0xff]
    %v80 = vld [vmem:[#allocation5 + $0xa0] sm:$0xff]
    %v81 = vld [vmem:[#allocation5 + $0xa8] sm:$0xff]
    %v82 = vld [vmem:[#allocation5 + $0xb0] sm:$0xff]
    %v83 = vld [vmem:[#allocation5 + $0xb8] sm:$0xff]
    %v84 = vld [vmem:[#allocation5 + $0xc0] sm:$0xff]
    %v85 = vld [vmem:[#allocation5 + $0xc8] sm:$0xff]
    %v86 = vld [vmem:[#allocation5 + $0xd0] sm:$0xff]
    %v87 = vld [vmem:[#allocation5 + $0xd8] sm:$0xff]
    %v88 = vld [vmem:[#allocation5 + $0xe0] sm:$0xff]
    %v89 = vld [vmem:[#allocation5 + $0xe8] sm:$0xff]
    %v90 = vld [vmem:[#allocation5 + $0xf0] sm:$0xff]
    %v91 = vld [vmem:[#allocation5 + $0xf8] sm:$0xff]
    %v92 = vld [vmem:[#allocation5 + $0x100] sm:$0xff]
    %v93 = vld [vmem:[#allocation5 + $0x108] sm:$0xff]
    %v94 = vld [vmem:[#allocation5 + $0x110] sm:$0xff]
    %v95 = vld [vmem:[#allocation5 + $0x118] sm:$0xff]
    %v96 = vld [vmem:[#allocation5 + $0x120] sm:$0xff]
    %v97 = vld [vmem:[#allocation5 + $0x128] sm:$0xff]
    %v98 = vld [vmem:[#allocation5 + $0x130] sm:$0xff]
    %v99 = vld [vmem:[#allocation5 + $0x138] sm:$0xff]
    %v100 = vld [vmem:[#allocation5 + $0x140] sm:$0xff]
    %v101 = vld [vmem:[#allocation5 + $0x148] sm:$0xff]
    %v102 = vld [vmem:[#allocation5 + $0x150] sm:$0xff]
    %v103 = vld [vmem:[#allocation5 + $0x158] sm:$0xff]
    %v104 = vld [vmem:[#allocation5 + $0x160] sm:$0xff]
    %v105 = vld [vmem:[#allocation5 + $0x168] sm:$0xff]
    %v106 = vld [vmem:[#allocation5 + $0x170] sm:$0xff]
    %v107 = vld [vmem:[#allocation5 + $0x178] sm:$0xff]
    %v108 = vld [vmem:[#allocation5 + $0x180] sm:$0xff]
    %v109 = vld [vmem:[#allocation5 + $0x188] sm:$0xff]
    %v110 = vld [vmem:[#allocation5 + $0x190] sm:$0xff]
    %v111 = vld [vmem:[#allocation5 + $0x198] sm:$0xff]
    %v112 = vld [vmem:[#allocation5 + $0x1a0] sm:$0xff]
    %v113 = vld [vmem:[#allocation5 + $0x1a8] sm:$0xff]
    %v114 = vld [vmem:[#allocation5 + $0x1b0] sm:$0xff]
    %v115 = vld [vmem:[#allocation5 + $0x1b8] sm:$0xff]
    %v116 = vld [vmem:[#allocation5 + $0x1c0] sm:$0xff]
    %v117 = vld [vmem:[#allocation5 + $0x1c8] sm:$0xff]
    %v118 = vld [vmem:[#allocation5 + $0x1d0] sm:$0xff]
    %v119 = vld [vmem:[#allocation5 + $0x1d8] sm:$0xff]
    %v120 = vld [vmem:[#allocation5 + $0x1e0] sm:$0xff]
    %v121 = vld [vmem:[#allocation5 + $0x1e8] sm:$0xff]
    %v122 = vld [vmem:[#allocation5 + $0x1f0] sm:$0xff]
    %v123 = vld [vmem:[#allocation5 + $0x1f8] sm:$0xff]
    %v124 = vld [vmem:[#allocation5 + $0x200] sm:$0xff]
    %v125 = vld [vmem:[#allocation5 + $0x208] sm:$0xff]
    %v126 = vld [vmem:[#allocation5 + $0x210] sm:$0xff]
    %v127 = vld [vmem:[#allocation5 + $0x218] sm:$0xff]
    %v128 = vld [vmem:[#allocation5 + $0x220] sm:$0xff]
    %v129 = vld [vmem:[#allocation5 + $0x228] sm:$0xff]
    %v130 = vld [vmem:[#allocation5 + $0x230] sm:$0xff]
    %v131 = vld [vmem:[#allocation5 + $0x238] sm:$0xff]
    %v132 = vld [vmem:[#allocation5 + $0x240] sm:$0xff]
    %v133 = vld [vmem:[#allocation5 + $0x248] sm:$0xff]
    %v134 = vld [vmem:[#allocation5 + $0x250] sm:$0xff]
    %v135 = vld [vmem:[#allocation5 + $0x258] sm:$0xff]
    %v136 = vld [vmem:[#allocation5 + $0x260] sm:$0xff]
    %v137 = vld [vmem:[#allocation5 + $0x268] sm:$0xff]
    %v138 = vld [vmem:[#allocation5 + $0x270] sm:$0xff]
    %v139 = vld [vmem:[#allocation5 + $0x278] sm:$0xff]
    %v140 = vld [vmem:[#allocation5 + $0x280] sm:$0xff]
    %v141 = vld [vmem:[#allocation5 + $0x288] sm:$0xff]
    %v142 = vld [vmem:[#allocation5 + $0x290] sm:$0xff]
    %v143 = vld [vmem:[#allocation5 + $0x298] sm:$0xff]
    %v144 = vld [vmem:[#allocation5 + $0x2a0] sm:$0xff]
    %v145 = vld [vmem:[#allocation5 + $0x2a8] sm:$0xff]
    %v146 = vld [vmem:[#allocation5 + $0x2b0] sm:$0xff]
    %v147 = vld [vmem:[#allocation5 + $0x2b8] sm:$0xff]
    %v148 = vld [vmem:[#allocation5 + $0x2c0] sm:$0xff]
    %v149 = vld [vmem:[#allocation5 + $0x2c8] sm:$0xff]
    %v150 = vld [vmem:[#allocation5 + $0x2d0] sm:$0xff]
    %v151 = vld [vmem:[#allocation5 + $0x2d8] sm:$0xff]
    %v152 = vld [vmem:[#allocation5 + $0x2e0] sm:$0xff]
    %v153 = vld [vmem:[#allocation5 + $0x2e8] sm:$0xff]
    %v154 = vld [vmem:[#allocation5 + $0x2f0] sm:$0xff]
    %v155 = vld [vmem:[#allocation5 + $0x2f8] sm:$0xff]
    %v156 = vld [vmem:[#allocation5 + $0x300] sm:$0xff]
    %v157 = vld [vmem:[#allocation5 + $0x308] sm:$0xff]
    %v158 = vld [vmem:[#allocation5 + $0x310] sm:$0xff]
    %v159 = vld [vmem:[#allocation5 + $0x318] sm:$0xff]
    %v160 = vld [vmem:[#allocation5 + $0x320] sm:$0xff]
    %v161 = vld [vmem:[#allocation5 + $0x328] sm:$0xff]
    %v162 = vld [vmem:[#allocation5 + $0x330] sm:$0xff]
    %v163 = vld [vmem:[#allocation5 + $0x338] sm:$0xff]
    %v164 = vld [vmem:[#allocation5 + $0x340] sm:$0xff]
    %v165 = vld [vmem:[#allocation5 + $0x348] sm:$0xff]
    %v166 = vld [vmem:[#allocation5 + $0x350] sm:$0xff]
    %v167 = vld [vmem:[#allocation5 + $0x358] sm:$0xff]
    %v168 = vld [vmem:[#allocation5 + $0x360] sm:$0xff]
    %v169 = vld [vmem:[#allocation5 + $0x368] sm:$0xff]
    %v170 = vld [vmem:[#allocation5 + $0x370] sm:$0xff]
    %v171 = vld [vmem:[#allocation5 + $0x378] sm:$0xff]
    %v172 = vld [vmem:[#allocation5 + $0x380] sm:$0xff]
    %v173 = vld [vmem:[#allocation5 + $0x388] sm:$0xff]
    %v174 = vld [vmem:[#allocation5 + $0x390] sm:$0xff]
    %v175 = vld [vmem:[#allocation5 + $0x398] sm:$0xff]
    %v176 = vld [vmem:[#allocation5 + $0x3a0] sm:$0xff]
    %v177 = vld [vmem:[#allocation5 + $0x3a8] sm:$0xff]
    %v178 = vld [vmem:[#allocation5 + $0x3b0] sm:$0xff]
    %v179 = vld [vmem:[#allocation5 + $0x3b8] sm:$0xff]
    %v180 = vld [vmem:[#allocation5 + $0x3c0] sm:$0xff]
    %v181 = vld [vmem:[#allocation5 + $0x3c8] sm:$0xff]
    %v182 = vld [vmem:[#allocation5 + $0x3d0] sm:$0xff]
    %v183 = vld [vmem:[#allocation5 + $0x3d8] sm:$0xff]
    %v184 = vld [vmem:[#allocation5 + $0x3e0] sm:$0xff]
    %v185 = vld [vmem:[#allocation5 + $0x3e8] sm:$0xff]
    %v186 = vld [vmem:[#allocation5 + $0x3f0] sm:$0xff]
    %v187 = vld [vmem:[#allocation5 + $0x3f8] sm:$0xff]
    %v188 = vld [vmem:[#allocation5 + $0x400] sm:$0xff]
    %v189 = vld [vmem:[#allocation5 + $0x408] sm:$0xff]
    %v190 = vld [vmem:[#allocation5 + $0x410] sm:$0xff]
    %v191 = vld [vmem:[#allocation5 + $0x418] sm:$0xff]
    %v192 = vld [vmem:[#allocation5 + $0x420] sm:$0xff]
    %v193 = vld [vmem:[#allocation5 + $0x428] sm:$0xff]
    %v194 = vld [vmem:[#allocation5 + $0x430] sm:$0xff]
    %v195 = vld [vmem:[#allocation5 + $0x438] sm:$0xff]
    %v196 = vld [vmem:[#allocation5 + $0x440] sm:$0xff]
    %v197 = vld [vmem:[#allocation5 + $0x448] sm:$0xff]
    %v198 = vld [vmem:[#allocation5 + $0x450] sm:$0xff]
    %v199 = vld [vmem:[#allocation5 + $0x458] sm:$0xff]
    %v200 = vld [vmem:[#allocation5 + $0x460] sm:$0xff]
    %v201 = vld [vmem:[#allocation5 + $0x468] sm:$0xff]
    %v202 = vld [vmem:[#allocation5 + $0x470] sm:$0xff]
    %v203 = vld [vmem:[#allocation5 + $0x478] sm:$0xff]
    %v204 = vld [vmem:[#allocation5 + $0x480] sm:$0xff]
    %v205 = vld [vmem:[#allocation5 + $0x488] sm:$0xff]
    %v206 = vld [vmem:[#allocation5 + $0x490] sm:$0xff]
    %v207 = vld [vmem:[#allocation5 + $0x498] sm:$0xff]
    %v208 = vld [vmem:[#allocation5 + $0x4a0] sm:$0xff]
    %v209 = vld [vmem:[#allocation5 + $0x4a8] sm:$0xff]
    %v210 = vld [vmem:[#allocation5 + $0x4b0] sm:$0xff]
    %v211 = vld [vmem:[#allocation5 + $0x4b8] sm:$0xff]
    %v212 = vld [vmem:[#allocation5 + $0x4c0] sm:$0xff]
    %v213 = vld [vmem:[#allocation5 + $0x4c8] sm:$0xff]
    %v214 = vld [vmem:[#allocation5 + $0x4d0] sm:$0xff]
    %v215 = vld [vmem:[#allocation5 + $0x4d8] sm:$0xff]
    %v216 = vld [vmem:[#allocation5 + $0x4e0] sm:$0xff]
    %v217 = vld [vmem:[#allocation5 + $0x4e8] sm:$0xff]
    %v218 = vld [vmem:[#allocation5 + $0x4f0] sm:$0xff]
    %v219 = vld [vmem:[#allocation5 + $0x4f8] sm:$0xff]
    %v220 = vld [vmem:[#allocation5 + $0x500] sm:$0xff]
    %v221 = vld [vmem:[#allocation5 + $0x508] sm:$0xff]
    %v222 = vld [vmem:[#allocation5 + $0x510] sm:$0xff]
    %v223 = vld [vmem:[#allocation5 + $0x518] sm:$0xff]
    %v224 = vld [vmem:[#allocation5 + $0x520] sm:$0xff]
    %v225 = vld [vmem:[#allocation5 + $0x528] sm:$0xff]
    %v226 = vld [vmem:[#allocation5 + $0x530] sm:$0xff]
    %v227 = vld [vmem:[#allocation5 + $0x538] sm:$0xff]
    %v228 = vld [vmem:[#allocation5 + $0x540] sm:$0xff]
    %v229 = vld [vmem:[#allocation5 + $0x548] sm:$0xff]
    %v230 = vld [vmem:[#allocation5 + $0x550] sm:$0xff]
    %v231 = vld [vmem:[#allocation5 + $0x558] sm:$0xff]
    %v232 = vld [vmem:[#allocation5 + $0x560] sm:$0xff]
    %v233 = vld [vmem:[#allocation5 + $0x568] sm:$0xff]
    %v234 = vld [vmem:[#allocation5 + $0x570] sm:$0xff]
    %v235 = vld [vmem:[#allocation5 + $0x578] sm:$0xff]
    %v236 = vld [vmem:[#allocation5 + $0x580] sm:$0xff]
    %v237 = vld [vmem:[#allocation5 + $0x588] sm:$0xff]
    %v238 = vld [vmem:[#allocation5 + $0x590] sm:$0xff]
    %v239 = vld [vmem:[#allocation5 + $0x598] sm:$0xff]
    %v240 = vld [vmem:[#allocation5 + $0x5a0] sm:$0xff]
    %v241 = vld [vmem:[#allocation5 + $0x5a8] sm:$0xff]
    %v242 = vld [vmem:[#allocation5 + $0x5b0] sm:$0xff]
    %v243 = vld [vmem:[#allocation5 + $0x5b8] sm:$0xff]
    %v244 = vld [vmem:[#allocation5 + $0x5c0] sm:$0xff]
    %v245 = vld [vmem:[#allocation5 + $0x5c8] sm:$0xff]
    %v246 = vld [vmem:[#allocation5 + $0x5d0] sm:$0xff]
    %v247 = vld [vmem:[#allocation5 + $0x5d8] sm:$0xff]
    %v248 = vld [vmem:[#allocation5 + $0x5e0] sm:$0xff]
    %v249 = vld [vmem:[#allocation5 + $0x5e8] sm:$0xff]
    %v250 = vld [vmem:[#allocation5 + $0x5f0] sm:$0xff]
    %v251 = vld [vmem:[#allocation5 + $0x5f8] sm:$0xff]
    %v252 = vld [vmem:[%s2] sm:$0xf]
    %v254 = vlaneseq
    %v255 = vshrl.u32 %v254, 7
    %v256 = vsub.s32 0, %v255
    %v257 = vrot.slane %v252, %v256
    %v258 = vlaneseq
    %v259 = vshrl.u32 %v258, 7
    %v260 = vsub.s32 1, %v259
    %v261 = vrot.slane %v252, %v260
    %v262 = vlaneseq
    %v263 = vshrl.u32 %v262, 7
    %v264 = vsub.s32 2, %v263
    %v265 = vrot.slane %v252, %v264
    %v266 = vlaneseq
    %v267 = vshrl.u32 %v266, 7
    %v268 = vsub.s32 3, %v267
    %v269 = vrot.slane %v252, %v268
    %v275 = vcombine.high %v59, %v59
    %v277 = vunpack.c.l.s4 1966171168
    %v278 = vunpack.c.0.s8 %v277
    %v279 = vlaneseq
    %v280 = vshrl.u32 %v279, 7
    %v281 = vsub.s32 %v278, %v280
    %v282 = vrot.slane %v59, %v281
    %v284 = vunpack.c.l.s4 1966171168
    %v285 = vunpack.c.0.s8 %v284
    %v286 = vlaneseq
    %v287 = vshrl.u32 %v286, 7
    %v288 = vsub.s32 %v285, %v287
    %v289 = vrot.slane %v275, %v288
    %v290 = vcombine.high %v282, %v282
    %v291 = vcombine.high %v289, %v289
    %v293 = vunpack.c.l.s4 1966171168
    %v294 = vunpack.c.0.s8 %v293
    %v295 = vlaneseq
    %v296 = vshrl.u32 %v295, 7
    %v297 = vsub.s32 %v294, %v296
    %v298 = vrot.slane %v282, %v297
    %v300 = vunpack.c.l.s4 1966171168
    %v301 = vunpack.c.0.s8 %v300
    %v302 = vlaneseq
    %v303 = vshrl.u32 %v302, 7
    %v304 = vsub.s32 %v301, %v303
    %v305 = vrot.slane %v289, %v304
    %v307 = vunpack.c.l.s4 1966171168
    %v308 = vunpack.c.0.s8 %v307
    %v309 = vlaneseq
    %v310 = vshrl.u32 %v309, 7
    %v311 = vsub.s32 %v308, %v310
    %v312 = vrot.slane %v290, %v311
    %v314 = vunpack.c.l.s4 1966171168
    %v315 = vunpack.c.0.s8 %v314
    %v316 = vlaneseq
    %v317 = vshrl.u32 %v316, 7
    %v318 = vsub.s32 %v315, %v317
    %v319 = vrot.slane %v291, %v318
    %v320 = vcombine.high %v298, %v298
    %v321 = vcombine.high %v312, %v312
    %v520 = vunpack.c.l.b16 %v60
    %v521 = vunpack.c.h.b16 %v60
    %v522 = vunpack.c.l.b16 %v61
    %v523 = vunpack.c.h.b16 %v61
    %v524 = vunpack.c.l.b16 %v62
    %v525 = vunpack.c.h.b16 %v62
    %v526 = vunpack.c.l.b16 %v63
    %v527 = vunpack.c.h.b16 %v63
    %v528 = vunpack.c.l.b16 %v64
    %v529 = vunpack.c.h.b16 %v64
    %v530 = vunpack.c.l.b16 %v65
    %v531 = vunpack.c.h.b16 %v65
    %v532 = vunpack.c.l.b16 %v66
    %v533 = vunpack.c.h.b16 %v66
    %v534 = vunpack.c.l.b16 %v67
    %v535 = vunpack.c.h.b16 %v67
    %v536 = vunpack.c.l.b16 %v68
    %v537 = vunpack.c.h.b16 %v68
    %v538 = vunpack.c.l.b16 %v69
    %v539 = vunpack.c.h.b16 %v69
    %v540 = vunpack.c.l.b16 %v70
    %v541 = vunpack.c.h.b16 %v70
    %v542 = vunpack.c.l.b16 %v71
    %v543 = vunpack.c.h.b16 %v71
    %v544 = vunpack.c.l.b16 %v72
    %v545 = vunpack.c.h.b16 %v72
    %v546 = vunpack.c.l.b16 %v73
    %v547 = vunpack.c.h.b16 %v73
    %v548 = vunpack.c.l.b16 %v74
    %v549 = vunpack.c.h.b16 %v74
    %v550 = vunpack.c.l.b16 %v75
    %v551 = vunpack.c.h.b16 %v75
    %v552 = vunpack.c.l.b16 %v76
    %v553 = vunpack.c.h.b16 %v76
    %v554 = vunpack.c.l.b16 %v77
    %v555 = vunpack.c.h.b16 %v77
    %v556 = vunpack.c.l.b16 %v78
    %v557 = vunpack.c.h.b16 %v78
    %v558 = vunpack.c.l.b16 %v79
    %v559 = vunpack.c.h.b16 %v79
    %v560 = vunpack.c.l.b16 %v80
    %v561 = vunpack.c.h.b16 %v80
    %v562 = vunpack.c.l.b16 %v81
    %v563 = vunpack.c.h.b16 %v81
    %v564 = vunpack.c.l.b16 %v82
    %v565 = vunpack.c.h.b16 %v82
    %v566 = vunpack.c.l.b16 %v83
    %v567 = vunpack.c.h.b16 %v83
    %v568 = vunpack.c.l.b16 %v84
    %v569 = vunpack.c.h.b16 %v84
    %v570 = vunpack.c.l.b16 %v85
    %v571 = vunpack.c.h.b16 %v85
    %v572 = vunpack.c.l.b16 %v86
    %v573 = vunpack.c.h.b16 %v86
    %v574 = vunpack.c.l.b16 %v87
    %v575 = vunpack.c.h.b16 %v87
    %v576 = vunpack.c.l.b16 %v88
    %v577 = vunpack.c.h.b16 %v88
    %v578 = vunpack.c.l.b16 %v89
    %v579 = vunpack.c.h.b16 %v89
    %v580 = vunpack.c.l.b16 %v90
    %v581 = vunpack.c.h.b16 %v90
    %v582 = vunpack.c.l.b16 %v91
    %v583 = vunpack.c.h.b16 %v91
    %v584 = vunpack.c.l.b16 %v92
    %v585 = vunpack.c.h.b16 %v92
    %v586 = vunpack.c.l.b16 %v93
    %v587 = vunpack.c.h.b16 %v93
    %v588 = vunpack.c.l.b16 %v94
    %v589 = vunpack.c.h.b16 %v94
    %v590 = vunpack.c.l.b16 %v95
    %v591 = vunpack.c.h.b16 %v95
    %v592 = vunpack.c.l.b16 %v96
    %v593 = vunpack.c.h.b16 %v96
    %v594 = vunpack.c.l.b16 %v97
    %v595 = vunpack.c.h.b16 %v97
    %v596 = vunpack.c.l.b16 %v98
    %v597 = vunpack.c.h.b16 %v98
    %v598 = vunpack.c.l.b16 %v99
    %v599 = vunpack.c.h.b16 %v99
    %v600 = vunpack.c.l.b16 %v100
    %v601 = vunpack.c.h.b16 %v100
    %v602 = vunpack.c.l.b16 %v101
    %v603 = vunpack.c.h.b16 %v101
    %v604 = vunpack.c.l.b16 %v102
    %v605 = vunpack.c.h.b16 %v102
    %v606 = vunpack.c.l.b16 %v103
    %v607 = vunpack.c.h.b16 %v103
    %v608 = vunpack.c.l.b16 %v104
    %v609 = vunpack.c.h.b16 %v104
    %v610 = vunpack.c.l.b16 %v105
    %v611 = vunpack.c.h.b16 %v105
    %v612 = vunpack.c.l.b16 %v106
    %v613 = vunpack.c.h.b16 %v106
    %v614 = vunpack.c.l.b16 %v107
    %v615 = vunpack.c.h.b16 %v107
    %v616 = vunpack.c.l.b16 %v108
    %v617 = vunpack.c.h.b16 %v108
    %v618 = vunpack.c.l.b16 %v109
    %v619 = vunpack.c.h.b16 %v109
    %v620 = vunpack.c.l.b16 %v110
    %v621 = vunpack.c.h.b16 %v110
    %v622 = vunpack.c.l.b16 %v111
    %v623 = vunpack.c.h.b16 %v111
    %v624 = vunpack.c.l.b16 %v112
    %v625 = vunpack.c.h.b16 %v112
    %v626 = vunpack.c.l.b16 %v113
    %v627 = vunpack.c.h.b16 %v113
    %v628 = vunpack.c.l.b16 %v114
    %v629 = vunpack.c.h.b16 %v114
    %v630 = vunpack.c.l.b16 %v115
    %v631 = vunpack.c.h.b16 %v115
    %v632 = vunpack.c.l.b16 %v116
    %v633 = vunpack.c.h.b16 %v116
    %v634 = vunpack.c.l.b16 %v117
    %v635 = vunpack.c.h.b16 %v117
    %v636 = vunpack.c.l.b16 %v118
    %v637 = vunpack.c.h.b16 %v118
    %v638 = vunpack.c.l.b16 %v119
    %v639 = vunpack.c.h.b16 %v119
    %v640 = vunpack.c.l.b16 %v120
    %v641 = vunpack.c.h.b16 %v120
    %v642 = vunpack.c.l.b16 %v121
    %v643 = vunpack.c.h.b16 %v121
    %v644 = vunpack.c.l.b16 %v122
    %v645 = vunpack.c.h.b16 %v122
    %v646 = vunpack.c.l.b16 %v123
    %v647 = vunpack.c.h.b16 %v123
    %v648 = vunpack.c.l.b16 %v124
    %v649 = vunpack.c.h.b16 %v124
    %v650 = vunpack.c.l.b16 %v125
    %v651 = vunpack.c.h.b16 %v125
    %v652 = vunpack.c.l.b16 %v126
    %v653 = vunpack.c.h.b16 %v126
    %v654 = vunpack.c.l.b16 %v127
    %v655 = vunpack.c.h.b16 %v127
    %v656 = vunpack.c.l.b16 %v128
    %v657 = vunpack.c.h.b16 %v128
    %v658 = vunpack.c.l.b16 %v129
    %v659 = vunpack.c.h.b16 %v129
    %v660 = vunpack.c.l.b16 %v130
    %v661 = vunpack.c.h.b16 %v130
    %v662 = vunpack.c.l.b16 %v131
    %v663 = vunpack.c.h.b16 %v131
    %v664 = vunpack.c.l.b16 %v132
    %v665 = vunpack.c.h.b16 %v132
    %v666 = vunpack.c.l.b16 %v133
    %v667 = vunpack.c.h.b16 %v133
    %v668 = vunpack.c.l.b16 %v134
    %v669 = vunpack.c.h.b16 %v134
    %v670 = vunpack.c.l.b16 %v135
    %v671 = vunpack.c.h.b16 %v135
    %v672 = vunpack.c.l.b16 %v136
    %v673 = vunpack.c.h.b16 %v136
    %v674 = vunpack.c.l.b16 %v137
    %v675 = vunpack.c.h.b16 %v137
    %v676 = vunpack.c.l.b16 %v138
    %v677 = vunpack.c.h.b16 %v138
    %v678 = vunpack.c.l.b16 %v139
    %v679 = vunpack.c.h.b16 %v139
    %v680 = vunpack.c.l.b16 %v140
    %v681 = vunpack.c.h.b16 %v140
    %v682 = vunpack.c.l.b16 %v141
    %v683 = vunpack.c.h.b16 %v141
    %v684 = vunpack.c.l.b16 %v142
    %v685 = vunpack.c.h.b16 %v142
    %v686 = vunpack.c.l.b16 %v143
    %v687 = vunpack.c.h.b16 %v143
    %v688 = vunpack.c.l.b16 %v144
    %v689 = vunpack.c.h.b16 %v144
    %v690 = vunpack.c.l.b16 %v145
    %v691 = vunpack.c.h.b16 %v145
    %v692 = vunpack.c.l.b16 %v146
    %v693 = vunpack.c.h.b16 %v146
    %v694 = vunpack.c.l.b16 %v147
    %v695 = vunpack.c.h.b16 %v147
    %v696 = vunpack.c.l.b16 %v148
    %v697 = vunpack.c.h.b16 %v148
    %v698 = vunpack.c.l.b16 %v149
    %v699 = vunpack.c.h.b16 %v149
    %v700 = vunpack.c.l.b16 %v150
    %v701 = vunpack.c.h.b16 %v150
    %v702 = vunpack.c.l.b16 %v151
    %v703 = vunpack.c.h.b16 %v151
    %v704 = vunpack.c.l.b16 %v152
    %v705 = vunpack.c.h.b16 %v152
    %v706 = vunpack.c.l.b16 %v153
    %v707 = vunpack.c.h.b16 %v153
    %v708 = vunpack.c.l.b16 %v154
    %v709 = vunpack.c.h.b16 %v154
    %v710 = vunpack.c.l.b16 %v155
    %v711 = vunpack.c.h.b16 %v155
    %v712 = vunpack.c.l.b16 %v156
    %v713 = vunpack.c.h.b16 %v156
    %v714 = vunpack.c.l.b16 %v157
    %v715 = vunpack.c.h.b16 %v157
    %v716 = vunpack.c.l.b16 %v158
    %v717 = vunpack.c.h.b16 %v158
    %v718 = vunpack.c.l.b16 %v159
    %v719 = vunpack.c.h.b16 %v159
    %v720 = vunpack.c.l.b16 %v160
    %v721 = vunpack.c.h.b16 %v160
    %v722 = vunpack.c.l.b16 %v161
    %v723 = vunpack.c.h.b16 %v161
    %v724 = vunpack.c.l.b16 %v162
    %v725 = vunpack.c.h.b16 %v162
    %v726 = vunpack.c.l.b16 %v163
    %v727 = vunpack.c.h.b16 %v163
    %v728 = vunpack.c.l.b16 %v164
    %v729 = vunpack.c.h.b16 %v164
    %v730 = vunpack.c.l.b16 %v165
    %v731 = vunpack.c.h.b16 %v165
    %v732 = vunpack.c.l.b16 %v166
    %v733 = vunpack.c.h.b16 %v166
    %v734 = vunpack.c.l.b16 %v167
    %v735 = vunpack.c.h.b16 %v167
    %v736 = vunpack.c.l.b16 %v168
    %v737 = vunpack.c.h.b16 %v168
    %v738 = vunpack.c.l.b16 %v169
    %v739 = vunpack.c.h.b16 %v169
    %v740 = vunpack.c.l.b16 %v170
    %v741 = vunpack.c.h.b16 %v170
    %v742 = vunpack.c.l.b16 %v171
    %v743 = vunpack.c.h.b16 %v171
    %v744 = vunpack.c.l.b16 %v172
    %v745 = vunpack.c.h.b16 %v172
    %v746 = vunpack.c.l.b16 %v173
    %v747 = vunpack.c.h.b16 %v173
    %v748 = vunpack.c.l.b16 %v174
    %v749 = vunpack.c.h.b16 %v174
    %v750 = vunpack.c.l.b16 %v175
    %v751 = vunpack.c.h.b16 %v175
    %v752 = vunpack.c.l.b16 %v176
    %v753 = vunpack.c.h.b16 %v176
    %v754 = vunpack.c.l.b16 %v177
    %v755 = vunpack.c.h.b16 %v177
    %v756 = vunpack.c.l.b16 %v178
    %v757 = vunpack.c.h.b16 %v178
    %v758 = vunpack.c.l.b16 %v179
    %v759 = vunpack.c.h.b16 %v179
    %v760 = vunpack.c.l.b16 %v180
    %v761 = vunpack.c.h.b16 %v180
    %v762 = vunpack.c.l.b16 %v181
    %v763 = vunpack.c.h.b16 %v181
    %v764 = vunpack.c.l.b16 %v182
    %v765 = vunpack.c.h.b16 %v182
    %v766 = vunpack.c.l.b16 %v183
    %v767 = vunpack.c.h.b16 %v183
    %v768 = vunpack.c.l.b16 %v184
    %v769 = vunpack.c.h.b16 %v184
    %v770 = vunpack.c.l.b16 %v185
    %v771 = vunpack.c.h.b16 %v185
    %v772 = vunpack.c.l.b16 %v186
    %v773 = vunpack.c.h.b16 %v186
    %v774 = vunpack.c.l.b16 %v187
    %v775 = vunpack.c.h.b16 %v187
    %v776 = vunpack.c.l.b16 %v188
    %v777 = vunpack.c.h.b16 %v188
    %v778 = vunpack.c.l.b16 %v189
    %v779 = vunpack.c.h.b16 %v189
    %v780 = vunpack.c.l.b16 %v190
    %v781 = vunpack.c.h.b16 %v190
    %v782 = vunpack.c.l.b16 %v191
    %v783 = vunpack.c.h.b16 %v191
    %v784 = vunpack.c.l.b16 %v192
    %v785 = vunpack.c.h.b16 %v192
    %v786 = vunpack.c.l.b16 %v193
    %v787 = vunpack.c.h.b16 %v193
    %v788 = vunpack.c.l.b16 %v194
    %v789 = vunpack.c.h.b16 %v194
    %v790 = vunpack.c.l.b16 %v195
    %v791 = vunpack.c.h.b16 %v195
    %v792 = vunpack.c.l.b16 %v196
    %v793 = vunpack.c.h.b16 %v196
    %v794 = vunpack.c.l.b16 %v197
    %v795 = vunpack.c.h.b16 %v197
    %v796 = vunpack.c.l.b16 %v198
    %v797 = vunpack.c.h.b16 %v198
    %v798 = vunpack.c.l.b16 %v199
    %v799 = vunpack.c.h.b16 %v199
    %v800 = vunpack.c.l.b16 %v200
    %v801 = vunpack.c.h.b16 %v200
    %v802 = vunpack.c.l.b16 %v201
    %v803 = vunpack.c.h.b16 %v201
    %v804 = vunpack.c.l.b16 %v202
    %v805 = vunpack.c.h.b16 %v202
    %v806 = vunpack.c.l.b16 %v203
    %v807 = vunpack.c.h.b16 %v203
    %v808 = vunpack.c.l.b16 %v204
    %v809 = vunpack.c.h.b16 %v204
    %v810 = vunpack.c.l.b16 %v205
    %v811 = vunpack.c.h.b16 %v205
    %v812 = vunpack.c.l.b16 %v206
    %v813 = vunpack.c.h.b16 %v206
    %v814 = vunpack.c.l.b16 %v207
    %v815 = vunpack.c.h.b16 %v207
    %v816 = vunpack.c.l.b16 %v208
    %v817 = vunpack.c.h.b16 %v208
    %v818 = vunpack.c.l.b16 %v209
    %v819 = vunpack.c.h.b16 %v209
    %v820 = vunpack.c.l.b16 %v210
    %v821 = vunpack.c.h.b16 %v210
    %v822 = vunpack.c.l.b16 %v211
    %v823 = vunpack.c.h.b16 %v211
    %v824 = vunpack.c.l.b16 %v212
    %v825 = vunpack.c.h.b16 %v212
    %v826 = vunpack.c.l.b16 %v213
    %v827 = vunpack.c.h.b16 %v213
    %v828 = vunpack.c.l.b16 %v214
    %v829 = vunpack.c.h.b16 %v214
    %v830 = vunpack.c.l.b16 %v215
    %v831 = vunpack.c.h.b16 %v215
    %v832 = vunpack.c.l.b16 %v216
    %v833 = vunpack.c.h.b16 %v216
    %v834 = vunpack.c.l.b16 %v217
    %v835 = vunpack.c.h.b16 %v217
    %v836 = vunpack.c.l.b16 %v218
    %v837 = vunpack.c.h.b16 %v218
    %v838 = vunpack.c.l.b16 %v219
    %v839 = vunpack.c.h.b16 %v219
    %v840 = vunpack.c.l.b16 %v220
    %v841 = vunpack.c.h.b16 %v220
    %v842 = vunpack.c.l.b16 %v221
    %v843 = vunpack.c.h.b16 %v221
    %v844 = vunpack.c.l.b16 %v222
    %v845 = vunpack.c.h.b16 %v222
    %v846 = vunpack.c.l.b16 %v223
    %v847 = vunpack.c.h.b16 %v223
    %v848 = vunpack.c.l.b16 %v224
    %v849 = vunpack.c.h.b16 %v224
    %v850 = vunpack.c.l.b16 %v225
    %v851 = vunpack.c.h.b16 %v225
    %v852 = vunpack.c.l.b16 %v226
    %v853 = vunpack.c.h.b16 %v226
    %v854 = vunpack.c.l.b16 %v227
    %v855 = vunpack.c.h.b16 %v227
    %v856 = vunpack.c.l.b16 %v228
    %v857 = vunpack.c.h.b16 %v228
    %v858 = vunpack.c.l.b16 %v229
    %v859 = vunpack.c.h.b16 %v229
    %v860 = vunpack.c.l.b16 %v230
    %v861 = vunpack.c.h.b16 %v230
    %v862 = vunpack.c.l.b16 %v231
    %v863 = vunpack.c.h.b16 %v231
    %v864 = vunpack.c.l.b16 %v232
    %v865 = vunpack.c.h.b16 %v232
    %v866 = vunpack.c.l.b16 %v233
    %v867 = vunpack.c.h.b16 %v233
    %v868 = vunpack.c.l.b16 %v234
    %v869 = vunpack.c.h.b16 %v234
    %v870 = vunpack.c.l.b16 %v235
    %v871 = vunpack.c.h.b16 %v235
    %v872 = vunpack.c.l.b16 %v236
    %v873 = vunpack.c.h.b16 %v236
    %v874 = vunpack.c.l.b16 %v237
    %v875 = vunpack.c.h.b16 %v237
    %v876 = vunpack.c.l.b16 %v238
    %v877 = vunpack.c.h.b16 %v238
    %v878 = vunpack.c.l.b16 %v239
    %v879 = vunpack.c.h.b16 %v239
    %v880 = vunpack.c.l.b16 %v240
    %v881 = vunpack.c.h.b16 %v240
    %v882 = vunpack.c.l.b16 %v241
    %v883 = vunpack.c.h.b16 %v241
    %v884 = vunpack.c.l.b16 %v242
    %v885 = vunpack.c.h.b16 %v242
    %v886 = vunpack.c.l.b16 %v243
    %v887 = vunpack.c.h.b16 %v243
    %v888 = vunpack.c.l.b16 %v244
    %v889 = vunpack.c.h.b16 %v244
    %v890 = vunpack.c.l.b16 %v245
    %v891 = vunpack.c.h.b16 %v245
    %v892 = vunpack.c.l.b16 %v246
    %v893 = vunpack.c.h.b16 %v246
    %v894 = vunpack.c.l.b16 %v247
    %v895 = vunpack.c.h.b16 %v247
    %v896 = vunpack.c.l.b16 %v248
    %v897 = vunpack.c.h.b16 %v248
    %v898 = vunpack.c.l.b16 %v249
    %v899 = vunpack.c.h.b16 %v249
    %v900 = vunpack.c.l.b16 %v250
    %v901 = vunpack.c.h.b16 %v250
    %v902 = vunpack.c.l.b16 %v251
    %v903 = vunpack.c.h.b16 %v251
    %v904 = vpack.c.b16 %v524, %v520
    %v905 = vpack.c.b16 %v525, %v521
    %v906 = vpack.c.b16 %v526, %v522
    %v907 = vpack.c.b16 %v527, %v523
    %v908 = vpack.c.b16 %v532, %v528
    %v909 = vpack.c.b16 %v533, %v529
    %v910 = vpack.c.b16 %v534, %v530
    %v911 = vpack.c.b16 %v535, %v531
    %v912 = vpack.c.b16 %v540, %v536
    %v913 = vpack.c.b16 %v541, %v537
    %v914 = vpack.c.b16 %v542, %v538
    %v915 = vpack.c.b16 %v543, %v539
    %v916 = vpack.c.b16 %v548, %v544
    %v917 = vpack.c.b16 %v549, %v545
    %v918 = vpack.c.b16 %v550, %v546
    %v919 = vpack.c.b16 %v551, %v547
    %v920 = vpack.c.b16 %v556, %v552
    %v921 = vpack.c.b16 %v557, %v553
    %v922 = vpack.c.b16 %v558, %v554
    %v923 = vpack.c.b16 %v559, %v555
    %v924 = vpack.c.b16 %v564, %v560
    %v925 = vpack.c.b16 %v565, %v561
    %v926 = vpack.c.b16 %v566, %v562
    %v927 = vpack.c.b16 %v567, %v563
    %v928 = vpack.c.b16 %v572, %v568
    %v929 = vpack.c.b16 %v573, %v569
    %v930 = vpack.c.b16 %v574, %v570
    %v931 = vpack.c.b16 %v575, %v571
    %v932 = vpack.c.b16 %v580, %v576
    %v933 = vpack.c.b16 %v581, %v577
    %v934 = vpack.c.b16 %v582, %v578
    %v935 = vpack.c.b16 %v583, %v579
    %v936 = vpack.c.b16 %v588, %v584
    %v937 = vpack.c.b16 %v589, %v585
    %v938 = vpack.c.b16 %v590, %v586
    %v939 = vpack.c.b16 %v591, %v587
    %v940 = vpack.c.b16 %v596, %v592
    %v941 = vpack.c.b16 %v597, %v593
    %v942 = vpack.c.b16 %v598, %v594
    %v943 = vpack.c.b16 %v599, %v595
    %v944 = vpack.c.b16 %v604, %v600
    %v945 = vpack.c.b16 %v605, %v601
    %v946 = vpack.c.b16 %v606, %v602
    %v947 = vpack.c.b16 %v607, %v603
    %v948 = vpack.c.b16 %v612, %v608
    %v949 = vpack.c.b16 %v613, %v609
    %v950 = vpack.c.b16 %v614, %v610
    %v951 = vpack.c.b16 %v615, %v611
    %v952 = vpack.c.b16 %v620, %v616
    %v953 = vpack.c.b16 %v621, %v617
    %v954 = vpack.c.b16 %v622, %v618
    %v955 = vpack.c.b16 %v623, %v619
    %v956 = vpack.c.b16 %v628, %v624
    %v957 = vpack.c.b16 %v629, %v625
    %v958 = vpack.c.b16 %v630, %v626
    %v959 = vpack.c.b16 %v631, %v627
    %v960 = vpack.c.b16 %v636, %v632
    %v961 = vpack.c.b16 %v637, %v633
    %v962 = vpack.c.b16 %v638, %v634
    %v963 = vpack.c.b16 %v639, %v635
    %v964 = vpack.c.b16 %v644, %v640
    %v965 = vpack.c.b16 %v645, %v641
    %v966 = vpack.c.b16 %v646, %v642
    %v967 = vpack.c.b16 %v647, %v643
    %v968 = vpack.c.b16 %v652, %v648
    %v969 = vpack.c.b16 %v653, %v649
    %v970 = vpack.c.b16 %v654, %v650
    %v971 = vpack.c.b16 %v655, %v651
    %v972 = vpack.c.b16 %v660, %v656
    %v973 = vpack.c.b16 %v661, %v657
    %v974 = vpack.c.b16 %v662, %v658
    %v975 = vpack.c.b16 %v663, %v659
    %v976 = vpack.c.b16 %v668, %v664
    %v977 = vpack.c.b16 %v669, %v665
    %v978 = vpack.c.b16 %v670, %v666
    %v979 = vpack.c.b16 %v671, %v667
    %v980 = vpack.c.b16 %v676, %v672
    %v981 = vpack.c.b16 %v677, %v673
    %v982 = vpack.c.b16 %v678, %v674
    %v983 = vpack.c.b16 %v679, %v675
    %v984 = vpack.c.b16 %v684, %v680
    %v985 = vpack.c.b16 %v685, %v681
    %v986 = vpack.c.b16 %v686, %v682
    %v987 = vpack.c.b16 %v687, %v683
    %v988 = vpack.c.b16 %v692, %v688
    %v989 = vpack.c.b16 %v693, %v689
    %v990 = vpack.c.b16 %v694, %v690
    %v991 = vpack.c.b16 %v695, %v691
    %v992 = vpack.c.b16 %v700, %v696
    %v993 = vpack.c.b16 %v701, %v697
    %v994 = vpack.c.b16 %v702, %v698
    %v995 = vpack.c.b16 %v703, %v699
    %v996 = vpack.c.b16 %v708, %v704
    %v997 = vpack.c.b16 %v709, %v705
    %v998 = vpack.c.b16 %v710, %v706
    %v999 = vpack.c.b16 %v711, %v707
    %v1000 = vpack.c.b16 %v716, %v712
    %v1001 = vpack.c.b16 %v717, %v713
    %v1002 = vpack.c.b16 %v718, %v714
    %v1003 = vpack.c.b16 %v719, %v715
    %v1004 = vpack.c.b16 %v724, %v720
    %v1005 = vpack.c.b16 %v725, %v721
    %v1006 = vpack.c.b16 %v726, %v722
    %v1007 = vpack.c.b16 %v727, %v723
    %v1008 = vpack.c.b16 %v732, %v728
    %v1009 = vpack.c.b16 %v733, %v729
    %v1010 = vpack.c.b16 %v734, %v730
    %v1011 = vpack.c.b16 %v735, %v731
    %v1012 = vpack.c.b16 %v740, %v736
    %v1013 = vpack.c.b16 %v741, %v737
    %v1014 = vpack.c.b16 %v742, %v738
    %v1015 = vpack.c.b16 %v743, %v739
    %v1016 = vpack.c.b16 %v748, %v744
    %v1017 = vpack.c.b16 %v749, %v745
    %v1018 = vpack.c.b16 %v750, %v746
    %v1019 = vpack.c.b16 %v751, %v747
    %v1020 = vpack.c.b16 %v756, %v752
    %v1021 = vpack.c.b16 %v757, %v753
    %v1022 = vpack.c.b16 %v758, %v754
    %v1023 = vpack.c.b16 %v759, %v755
    %v1024 = vpack.c.b16 %v764, %v760
    %v1025 = vpack.c.b16 %v765, %v761
    %v1026 = vpack.c.b16 %v766, %v762
    %v1027 = vpack.c.b16 %v767, %v763
    %v1028 = vpack.c.b16 %v772, %v768
    %v1029 = vpack.c.b16 %v773, %v769
    %v1030 = vpack.c.b16 %v774, %v770
    %v1031 = vpack.c.b16 %v775, %v771
    %v1032 = vpack.c.b16 %v780, %v776
    %v1033 = vpack.c.b16 %v781, %v777
    %v1034 = vpack.c.b16 %v782, %v778
    %v1035 = vpack.c.b16 %v783, %v779
    %v1036 = vpack.c.b16 %v788, %v784
    %v1037 = vpack.c.b16 %v789, %v785
    %v1038 = vpack.c.b16 %v790, %v786
    %v1039 = vpack.c.b16 %v791, %v787
    %v1040 = vpack.c.b16 %v796, %v792
    %v1041 = vpack.c.b16 %v797, %v793
    %v1042 = vpack.c.b16 %v798, %v794
    %v1043 = vpack.c.b16 %v799, %v795
    %v1044 = vpack.c.b16 %v804, %v800
    %v1045 = vpack.c.b16 %v805, %v801
    %v1046 = vpack.c.b16 %v806, %v802
    %v1047 = vpack.c.b16 %v807, %v803
    %v1048 = vpack.c.b16 %v812, %v808
    %v1049 = vpack.c.b16 %v813, %v809
    %v1050 = vpack.c.b16 %v814, %v810
    %v1051 = vpack.c.b16 %v815, %v811
    %v1052 = vpack.c.b16 %v820, %v816
    %v1053 = vpack.c.b16 %v821, %v817
    %v1054 = vpack.c.b16 %v822, %v818
    %v1055 = vpack.c.b16 %v823, %v819
    %v1056 = vpack.c.b16 %v828, %v824
    %v1057 = vpack.c.b16 %v829, %v825
    %v1058 = vpack.c.b16 %v830, %v826
    %v1059 = vpack.c.b16 %v831, %v827
    %v1060 = vpack.c.b16 %v836, %v832
    %v1061 = vpack.c.b16 %v837, %v833
    %v1062 = vpack.c.b16 %v838, %v834
    %v1063 = vpack.c.b16 %v839, %v835
    %v1064 = vpack.c.b16 %v844, %v840
    %v1065 = vpack.c.b16 %v845, %v841
    %v1066 = vpack.c.b16 %v846, %v842
    %v1067 = vpack.c.b16 %v847, %v843
    %v1068 = vpack.c.b16 %v852, %v848
    %v1069 = vpack.c.b16 %v853, %v849
    %v1070 = vpack.c.b16 %v854, %v850
    %v1071 = vpack.c.b16 %v855, %v851
    %v1072 = vpack.c.b16 %v860, %v856
    %v1073 = vpack.c.b16 %v861, %v857
    %v1074 = vpack.c.b16 %v862, %v858
    %v1075 = vpack.c.b16 %v863, %v859
    %v1076 = vpack.c.b16 %v868, %v864
    %v1077 = vpack.c.b16 %v869, %v865
    %v1078 = vpack.c.b16 %v870, %v866
    %v1079 = vpack.c.b16 %v871, %v867
    %v1080 = vpack.c.b16 %v876, %v872
    %v1081 = vpack.c.b16 %v877, %v873
    %v1082 = vpack.c.b16 %v878, %v874
    %v1083 = vpack.c.b16 %v879, %v875
    %v1084 = vpack.c.b16 %v884, %v880
    %v1085 = vpack.c.b16 %v885, %v881
    %v1086 = vpack.c.b16 %v886, %v882
    %v1087 = vpack.c.b16 %v887, %v883
    %v1088 = vpack.c.b16 %v892, %v888
    %v1089 = vpack.c.b16 %v893, %v889
    %v1090 = vpack.c.b16 %v894, %v890
    %v1091 = vpack.c.b16 %v895, %v891
    %v1092 = vpack.c.b16 %v900, %v896
    %v1093 = vpack.c.b16 %v901, %v897
    %v1094 = vpack.c.b16 %v902, %v898
    %v1095 = vpack.c.b16 %v903, %v899
    %1288 = vmatprep.subr.bf16.mxu0 %v933
    %1289 = vmatpush1.bf16.msra.mxu0 %v932
    %1290 = vmatprep.subr.bf16.mxu0 %v929
    %1291 = vmatpush1.bf16.msra.mxu0 %v928
    %1292 = vmatprep.subr.bf16.mxu0 %v925
    %1293 = vmatpush1.bf16.msra.mxu0 %v924
    %1294 = vmatprep.subr.bf16.mxu0 %v921
    %1295 = vmatpush1.bf16.msra.mxu0 %v920
    %1296 = vmatprep.subr.bf16.mxu0 %v917
    %1297 = vmatpush1.bf16.msra.mxu0 %v916
    %1298 = vmatprep.subr.bf16.mxu0 %v913
    %1299 = vmatpush1.bf16.msra.mxu0 %v912
    %1300 = vmatprep.subr.bf16.mxu0 %v909
    %1301 = vmatpush1.bf16.msra.mxu0 %v908
    %1302 = vmatprep.subr.bf16.mxu0 %v905
    %1303 = vmatpush1.bf16.msra.mxu0 %v904
    %1304 = vmatprep.subr.bf16.mxu0 %v965
    %1305 = vmatpush2.bf16.msra.mxu0 %v964
    %1306 = vmatprep.subr.bf16.mxu0 %v961
    %1307 = vmatpush2.bf16.msra.mxu0 %v960
    %1308 = vmatprep.subr.bf16.mxu0 %v957
    %1309 = vmatpush2.bf16.msra.mxu0 %v956
    %1310 = vmatprep.subr.bf16.mxu0 %v953
    %1311 = vmatpush2.bf16.msra.mxu0 %v952
    %1312 = vmatprep.subr.bf16.mxu0 %v949
    %1313 = vmatpush2.bf16.msra.mxu0 %v948
    %1314 = vmatprep.subr.bf16.mxu0 %v945
    %1315 = vmatpush2.bf16.msra.mxu0 %v944
    %1316 = vmatprep.subr.bf16.mxu0 %v941
    %1317 = vmatpush2.bf16.msra.mxu0 %v940
    %1318 = vmatprep.subr.bf16.mxu0 %v937
    %1319 = vmatpush2.bf16.msra.mxu0 %v936
    %1320 = vmatprep.mubr.bf16.mxu0 %v312
    %1321 = vmatmul.mubr.bf16.gmra.mxu0 %v298
    %v1322 = vpop.f32.mrf.mxu0
    %v1323 = vadd.f32 %v257, %v1322
    %v1324 = vpop.f32.mrf.mxu0
    %v1325 = vadd.f32 %v261, %v1324
    %v1326 = vpop.f32.mrf.mxu0
    %v1327 = vpop.f32.mrf.mxu0
    %1328 = vdwg.mxu0
    %1329 = vmatprep.subr.bf16.mxu0 %v997
    %1330 = vmatpush1.bf16.msra.mxu0 %v996
    %1331 = vmatprep.subr.bf16.mxu0 %v993
    %1332 = vmatpush1.bf16.msra.mxu0 %v992
    %1333 = vmatprep.subr.bf16.mxu0 %v989
    %1334 = vmatpush1.bf16.msra.mxu0 %v988
    %1335 = vmatprep.subr.bf16.mxu0 %v985
    %1336 = vmatpush1.bf16.msra.mxu0 %v984
    %1337 = vmatprep.subr.bf16.mxu0 %v981
    %1338 = vmatpush1.bf16.msra.mxu0 %v980
    %1339 = vmatprep.subr.bf16.mxu0 %v977
    %1340 = vmatpush1.bf16.msra.mxu0 %v976
    %1341 = vmatprep.subr.bf16.mxu0 %v973
    %1342 = vmatpush1.bf16.msra.mxu0 %v972
    %1343 = vmatprep.subr.bf16.mxu0 %v969
    %1344 = vmatpush1.bf16.msra.mxu0 %v968
    %1345 = vmatprep.subr.bf16.mxu0 %v1029
    %1346 = vmatpush2.bf16.msra.mxu0 %v1028
    %1347 = vmatprep.subr.bf16.mxu0 %v1025
    %1348 = vmatpush2.bf16.msra.mxu0 %v1024
    %1349 = vmatprep.subr.bf16.mxu0 %v1021
    %1350 = vmatpush2.bf16.msra.mxu0 %v1020
    %1351 = vmatprep.subr.bf16.mxu0 %v1017
    %1352 = vmatpush2.bf16.msra.mxu0 %v1016
    %1353 = vmatprep.subr.bf16.mxu0 %v1013
    %1354 = vmatpush2.bf16.msra.mxu0 %v1012
    %1355 = vmatprep.subr.bf16.mxu0 %v1009
    %1356 = vmatpush2.bf16.msra.mxu0 %v1008
    %1357 = vmatprep.subr.bf16.mxu0 %v1005
    %1358 = vmatpush2.bf16.msra.mxu0 %v1004
    %1359 = vmatprep.subr.bf16.mxu0 %v1001
    %1360 = vmatpush2.bf16.msra.mxu0 %v1000
    %1361 = vmatprep.mubr.bf16.mxu0 %v321
    %1362 = vmatmul.mubr.bf16.gmra.mxu0 %v320
    %v1363 = vpop.f32.mrf.mxu0
    %v1364 = vadd.f32 %v1323, %v1363
    %v1365 = vpop.f32.mrf.mxu0
    %v1366 = vadd.f32 %v1325, %v1365
    %v1367 = vpop.f32.mrf.mxu0
    %v1368 = vpop.f32.mrf.mxu0
    %1369 = vdwg.mxu0
    %1370 = vmatprep.subr.bf16.mxu0 %v1061
    %1371 = vmatpush1.bf16.msra.mxu0 %v1060
    %1372 = vmatprep.subr.bf16.mxu0 %v1057
    %1373 = vmatpush1.bf16.msra.mxu0 %v1056
    %1374 = vmatprep.subr.bf16.mxu0 %v1053
    %1375 = vmatpush1.bf16.msra.mxu0 %v1052
    %1376 = vmatprep.subr.bf16.mxu0 %v1049
    %1377 = vmatpush1.bf16.msra.mxu0 %v1048
    %1378 = vmatprep.subr.bf16.mxu0 %v1045
    %1379 = vmatpush1.bf16.msra.mxu0 %v1044
    %1380 = vmatprep.subr.bf16.mxu0 %v1041
    %1381 = vmatpush1.bf16.msra.mxu0 %v1040
    %1382 = vmatprep.subr.bf16.mxu0 %v1037
    %1383 = vmatpush1.bf16.msra.mxu0 %v1036
    %1384 = vmatprep.subr.bf16.mxu0 %v1033
    %1385 = vmatpush1.bf16.msra.mxu0 %v1032
    %1386 = vmatprep.subr.bf16.mxu0 %v1093
    %1387 = vmatpush2.bf16.msra.mxu0 %v1092
    %1388 = vmatprep.subr.bf16.mxu0 %v1089
    %1389 = vmatpush2.bf16.msra.mxu0 %v1088
    %1390 = vmatprep.subr.bf16.mxu0 %v1085
    %1391 = vmatpush2.bf16.msra.mxu0 %v1084
    %1392 = vmatprep.subr.bf16.mxu0 %v1081
    %1393 = vmatpush2.bf16.msra.mxu0 %v1080
    %1394 = vmatprep.subr.bf16.mxu0 %v1077
    %1395 = vmatpush2.bf16.msra.mxu0 %v1076
    %1396 = vmatprep.subr.bf16.mxu0 %v1073
    %1397 = vmatpush2.bf16.msra.mxu0 %v1072
    %1398 = vmatprep.subr.bf16.mxu0 %v1069
    %1399 = vmatpush2.bf16.msra.mxu0 %v1068
    %1400 = vmatprep.subr.bf16.mxu0 %v1065
    %1401 = vmatpush2.bf16.msra.mxu0 %v1064
    %1402 = vmatprep.mubr.bf16.mxu0 %v319
    %1403 = vmatmul.mubr.bf16.gmra.mxu0 %v305
    %v1404 = vpop.f32.mrf.mxu0
    %v1405 = vadd.f32 %v1364, %v1404
    %v1406 = vpop.f32.mrf.mxu0
    %v1407 = vadd.f32 %v1366, %v1406
    %v1408 = vpop.f32.mrf.mxu0
    %v1409 = vpop.f32.mrf.mxu0
    %1410 = vdwg.mxu0
    %1411 = vmatprep.subr.bf16.mxu0 %v935
    %1412 = vmatpush1.bf16.msra.mxu0 %v934
    %1413 = vmatprep.subr.bf16.mxu0 %v931
    %1414 = vmatpush1.bf16.msra.mxu0 %v930
    %1415 = vmatprep.subr.bf16.mxu0 %v927
    %1416 = vmatpush1.bf16.msra.mxu0 %v926
    %1417 = vmatprep.subr.bf16.mxu0 %v923
    %1418 = vmatpush1.bf16.msra.mxu0 %v922
    %1419 = vmatprep.subr.bf16.mxu0 %v919
    %1420 = vmatpush1.bf16.msra.mxu0 %v918
    %1421 = vmatprep.subr.bf16.mxu0 %v915
    %1422 = vmatpush1.bf16.msra.mxu0 %v914
    %1423 = vmatprep.subr.bf16.mxu0 %v911
    %1424 = vmatpush1.bf16.msra.mxu0 %v910
    %1425 = vmatprep.subr.bf16.mxu0 %v907
    %1426 = vmatpush1.bf16.msra.mxu0 %v906
    %1427 = vmatprep.subr.bf16.mxu0 %v967
    %1428 = vmatpush2.bf16.msra.mxu0 %v966
    %1429 = vmatprep.subr.bf16.mxu0 %v963
    %1430 = vmatpush2.bf16.msra.mxu0 %v962
    %1431 = vmatprep.subr.bf16.mxu0 %v959
    %1432 = vmatpush2.bf16.msra.mxu0 %v958
    %1433 = vmatprep.subr.bf16.mxu0 %v955
    %1434 = vmatpush2.bf16.msra.mxu0 %v954
    %1435 = vmatprep.subr.bf16.mxu0 %v951
    %1436 = vmatpush2.bf16.msra.mxu0 %v950
    %1437 = vmatprep.subr.bf16.mxu0 %v947
    %1438 = vmatpush2.bf16.msra.mxu0 %v946
    %1439 = vmatprep.subr.bf16.mxu0 %v943
    %1440 = vmatpush2.bf16.msra.mxu0 %v942
    %1441 = vmatprep.subr.bf16.mxu0 %v939
    %1442 = vmatpush2.bf16.msra.mxu0 %v938
    %1443 = vmatprep.mubr.bf16.mxu0 %v312
    %1444 = vmatmul.mubr.bf16.gmra.mxu0 %v298
    %v1445 = vpop.f32.mrf.mxu0
    %v1446 = vadd.f32 %v265, %v1445
    %v1447 = vpop.f32.mrf.mxu0
    %v1448 = vadd.f32 %v269, %v1447
    %v1449 = vpop.f32.mrf.mxu0
    %v1450 = vpop.f32.mrf.mxu0
    %1451 = vdwg.mxu0
    %1452 = vmatprep.subr.bf16.mxu0 %v999
    %1453 = vmatpush1.bf16.msra.mxu0 %v998
    %1454 = vmatprep.subr.bf16.mxu0 %v995
    %1455 = vmatpush1.bf16.msra.mxu0 %v994
    %1456 = vmatprep.subr.bf16.mxu0 %v991
    %1457 = vmatpush1.bf16.msra.mxu0 %v990
    %1458 = vmatprep.subr.bf16.mxu0 %v987
    %1459 = vmatpush1.bf16.msra.mxu0 %v986
    %1460 = vmatprep.subr.bf16.mxu0 %v983
    %1461 = vmatpush1.bf16.msra.mxu0 %v982
    %1462 = vmatprep.subr.bf16.mxu0 %v979
    %1463 = vmatpush1.bf16.msra.mxu0 %v978
    %1464 = vmatprep.subr.bf16.mxu0 %v975
    %1465 = vmatpush1.bf16.msra.mxu0 %v974
    %1466 = vmatprep.subr.bf16.mxu0 %v971
    %1467 = vmatpush1.bf16.msra.mxu0 %v970
    %1468 = vmatprep.subr.bf16.mxu0 %v1031
    %1469 = vmatpush2.bf16.msra.mxu0 %v1030
    %1470 = vmatprep.subr.bf16.mxu0 %v1027
    %1471 = vmatpush2.bf16.msra.mxu0 %v1026
    %1472 = vmatprep.subr.bf16.mxu0 %v1023
    %1473 = vmatpush2.bf16.msra.mxu0 %v1022
    %1474 = vmatprep.subr.bf16.mxu0 %v1019
    %1475 = vmatpush2.bf16.msra.mxu0 %v1018
    %1476 = vmatprep.subr.bf16.mxu0 %v1015
    %1477 = vmatpush2.bf16.msra.mxu0 %v1014
    %1478 = vmatprep.subr.bf16.mxu0 %v1011
    %1479 = vmatpush2.bf16.msra.mxu0 %v1010
    %1480 = vmatprep.subr.bf16.mxu0 %v1007
    %1481 = vmatpush2.bf16.msra.mxu0 %v1006
    %1482 = vmatprep.subr.bf16.mxu0 %v1003
    %1483 = vmatpush2.bf16.msra.mxu0 %v1002
    %1484 = vmatprep.mubr.bf16.mxu0 %v321
    %1485 = vmatmul.mubr.bf16.gmra.mxu0 %v320
    %v1486 = vpop.f32.mrf.mxu0
    %v1487 = vadd.f32 %v1446, %v1486
    %v1488 = vpop.f32.mrf.mxu0
    %v1489 = vadd.f32 %v1448, %v1488
    %v1490 = vpop.f32.mrf.mxu0
    %v1491 = vpop.f32.mrf.mxu0
    %1492 = vdwg.mxu0
    %1493 = vmatprep.subr.bf16.mxu0 %v1063
    %1494 = vmatpush1.bf16.msra.mxu0 %v1062
    %1495 = vmatprep.subr.bf16.mxu0 %v1059
    %1496 = vmatpush1.bf16.msra.mxu0 %v1058
    %1497 = vmatprep.subr.bf16.mxu0 %v1055
    %1498 = vmatpush1.bf16.msra.mxu0 %v1054
    %1499 = vmatprep.subr.bf16.mxu0 %v1051
    %1500 = vmatpush1.bf16.msra.mxu0 %v1050
    %1501 = vmatprep.subr.bf16.mxu0 %v1047
    %1502 = vmatpush1.bf16.msra.mxu0 %v1046
    %1503 = vmatprep.subr.bf16.mxu0 %v1043
    %1504 = vmatpush1.bf16.msra.mxu0 %v1042
    %1505 = vmatprep.subr.bf16.mxu0 %v1039
    %1506 = vmatpush1.bf16.msra.mxu0 %v1038
    %1507 = vmatprep.subr.bf16.mxu0 %v1035
    %1508 = vmatpush1.bf16.msra.mxu0 %v1034
    %1509 = vmatprep.subr.bf16.mxu0 %v1095
    %1510 = vmatpush2.bf16.msra.mxu0 %v1094
    %1511 = vmatprep.subr.bf16.mxu0 %v1091
    %1512 = vmatpush2.bf16.msra.mxu0 %v1090
    %1513 = vmatprep.subr.bf16.mxu0 %v1087
    %1514 = vmatpush2.bf16.msra.mxu0 %v1086
    %1515 = vmatprep.subr.bf16.mxu0 %v1083
    %1516 = vmatpush2.bf16.msra.mxu0 %v1082
    %1517 = vmatprep.subr.bf16.mxu0 %v1079
    %1518 = vmatpush2.bf16.msra.mxu0 %v1078
    %1519 = vmatprep.subr.bf16.mxu0 %v1075
    %1520 = vmatpush2.bf16.msra.mxu0 %v1074
    %1521 = vmatprep.subr.bf16.mxu0 %v1071
    %1522 = vmatpush2.bf16.msra.mxu0 %v1070
    %1523 = vmatprep.subr.bf16.mxu0 %v1067
    %1524 = vmatpush2.bf16.msra.mxu0 %v1066
    %1525 = vmatprep.mubr.bf16.mxu0 %v319
    %1526 = vmatmul.mubr.bf16.gmra.mxu0 %v305
    %v1527 = vpop.f32.mrf.mxu0
    %v1528 = vadd.f32 %v1487, %v1527
    %v1529 = vpop.f32.mrf.mxu0
    %v1530 = vadd.f32 %v1489, %v1529
    %v1531 = vpop.f32.mrf.mxu0
    %v1532 = vpop.f32.mrf.mxu0
    %1533 = vdwg.mxu0
    %v1534 = vmax.f32 %v1405, 0.0
    %v1535 = vmax.f32 %v1407, 0.0
    %v1536 = vmax.f32 %v1528, 0.0
    %v1537 = vmax.f32 %v1530, 0.0
    %v1538 = vld [vmem:[#allocation7] sm:$0xf]
    %v1540 = vlaneseq
    %v1541 = vshrl.u32 %v1540, 7
    %v1542 = vsub.s32 0, %v1541
    %v1543 = vrot.slane %v1538, %v1542
    %v1544 = vlaneseq
    %v1545 = vshrl.u32 %v1544, 7
    %v1546 = vsub.s32 1, %v1545
    %v1547 = vrot.slane %v1538, %v1546
    %v1548 = vlaneseq
    %v1549 = vshrl.u32 %v1548, 7
    %v1550 = vsub.s32 2, %v1549
    %v1551 = vrot.slane %v1538, %v1550
    %v1552 = vlaneseq
    %v1553 = vshrl.u32 %v1552, 7
    %v1554 = vsub.s32 3, %v1553
    %v1555 = vrot.slane %v1538, %v1554
    %v1560 = vmul.f32 %v1534, %v1543
    %v1561 = vmul.f32 %v1535, %v1547
    %v1562 = vmul.f32 %v1536, %v1551
    %v1563 = vmul.f32 %v1537, %v1555
    %vm1564 = vcmask 1041408
    %v1565 = vsel %vm1564, %v1560, 0.0
    %v1566 = vsel %vm1564, %v1561, 0.0
    %v1567 = vadd.f32 %v1565, %v1566
    %v1568 = vsel %vm1564, %v1562, 0.0
    %v1569 = vadd.f32 %v1567, %v1568
    %v1570 = vsel %vm1564, %v1563, 0.0
    %v1571 = vadd.f32 %v1569, %v1570
    %1572 = vadd.xlane.f32.xlu0 %v1571
    %v1573 = vpop.xlane.xlu0 %1572
    %v1574 = vld [vmem:[#allocation2] sm:$0x1]
    %v1576 = vlaneseq
    %v1577 = vshrl.u32 %v1576, 7
    %v1578 = vsub.s32 0, %v1577
    %v1579 = vrot.slane %v1574, %v1578
    %v1581 = vadd.f32 %v1573, %v1579
    %vm1582 = vcmask 1024
    %1583 = vst.msk [vmem:[%s5] sm:$0x3] %vm1582, %v1581
    // Predicated region
    $region34: #{tpu_custom_call.1} parent=1 // pred_check
      _
    $region35: #{tpu_custom_call.1} parent=1 // pred_check_branch
      %1585 = sbr.rel (0) target = $region37
    $region36: #{tpu_custom_call.1} parent=1 // pred_region
      _
    $region37: #{tpu_custom_call.1} parent=1 // pred_fallthru
      _
    // Predicated region
    $region38: #{tpu_custom_call.1} parent=1 // pred_check
      _
    $region39: #{tpu_custom_call.1} parent=1 // pred_check_branch
      %1587 = sbr.rel (0) target = $region41
    $region40: #{tpu_custom_call.1} parent=1 // pred_region
      _
    $region41: #{tpu_custom_call.1} parent=1 // pred_fallthru
      _
    %1588 = vsyncpa [#allocation4], 1
    %1589 = vsyncpa [#allocation6], 1

</llo_original>
